<compile_context>
chip_gen: v6e
topology: v6e:2x2x1
jax: 0.10.0
libtpu: 0.0.40
codegen_flags: <defaults>
</compile_context>

<pallas_src>
import functools

import jax
import jax.numpy as jnp
from jax import lax
from jax.experimental import pallas as pl
from jax.experimental.pallas import tpu as pltpu

_NEG_BIG = -1e30     # finite "-inf" for masking (no inf arithmetic anywhere)


def _round_up(x, m):
    return ((x + m - 1) // m) * m


def _infonce_kernel(xq_ref, xk_ref, loss_ref, m_sc, l_sc, pos_sc, *,
                    half, n_valid, n_pad, tile, exp_bf16):
    r = pl.program_id(0)          # query-row block    ("parallel")
    c = pl.program_id(1)          # key-column block   ("arbitrary" reduction)

    @pl.when(c == 0)
    def _init():
        m_sc[...] = jnp.full_like(m_sc, _NEG_BIG)
        l_sc[...] = jnp.zeros_like(l_sc)
        pos_sc[...] = jnp.zeros_like(pos_sc)

    # (tile, tile) similarity block on the MXU.  Operands are already
    # normalized and the query operand already carries 1/temperature, so this
    # is a single dot with f32 accumulation and no per-step VPU prep.
    s = lax.dot_general(
        xq_ref[...], xk_ref[...],
        dimension_numbers=(((1,), (1,)), ((), ())),
        preferred_element_type=jnp.float32)

    row0 = r * tile
    col0 = c * tile

    # ---- positive logit, extracted from `s` and gated to the column blocks
    # that can actually contain a positive for a valid row of this row block.
    vr = jnp.maximum(jnp.minimum(tile, n_valid - row0), 0)   # valid rows here
    p0 = (row0 + half) % n_valid                             # first positive col
    p1 = p0 + vr                                             # exclusive end (may wrap)
    hit = jnp.logical_and(p0 < col0 + tile,
                          col0 < jnp.minimum(p1, n_valid))
    hit = jnp.logical_or(hit,
                         jnp.logical_and(p1 > n_valid, col0 < p1 - n_valid))
    hit = jnp.logical_and(vr > 0, hit)

    @pl.when(hit)
    def _pos():
        rows = row0 + lax.broadcasted_iota(jnp.int32, s.shape, 0)
        cols = col0 + lax.broadcasted_iota(jnp.int32, s.shape, 1)
        pids = rows + half
        pids = jnp.where(pids >= n_valid, pids - n_valid, pids)   # (i + B) % 2B
        pos_sc[...] += jnp.sum(jnp.where(cols == pids, s, 0.0),
                               axis=1, keepdims=True)

    # ---- diagonal / padded-column masking, gated to the blocks that need it.
    need_mask = r == c
    if n_valid < n_pad:                          # static: only if padding exists
        need_mask = jnp.logical_or(need_mask, c == pl.num_programs(1) - 1)

    def _apply_mask(x):
        rows = row0 + lax.broadcasted_iota(jnp.int32, x.shape, 0)
        cols = col0 + lax.broadcasted_iota(jnp.int32, x.shape, 1)
        bad = rows == cols
        if n_valid < n_pad:
            bad = jnp.logical_or(bad, cols >= n_valid)
        return jnp.where(bad, _NEG_BIG, x)

    s = lax.cond(need_mask, _apply_mask, lambda x: x, s)

    # ---- online (flash-style) logsumexp across column blocks; stats in f32.
    m_prev = m_sc[...]
    m_new = jnp.maximum(m_prev, jnp.max(s, axis=1, keepdims=True))
    if exp_bf16:
        p = jnp.exp((s - m_new).astype(jnp.bfloat16)).astype(jnp.float32)
    else:
        p = jnp.exp(s - m_new)
    l_sc[...] = (jnp.exp(m_prev - m_new) * l_sc[...]
                 + jnp.sum(p, axis=1, keepdims=True))
    m_sc[...] = m_new

    @pl.when(c == pl.num_programs(1) - 1)
    def _finalize():
        per_row = (m_sc[...] + jnp.log(l_sc[...])) - pos_sc[...]
        rows = row0 + lax.broadcasted_iota(jnp.int32, per_row.shape, 0)
        loss_ref[...] = jnp.where(rows < n_valid, per_row, 0.0)


def infonce_loss(output1, output2, temperature=0.07, *,
                 matmul_dtype=jnp.bfloat16, tile=512):
    """JAX/Pallas equivalent of infoNCELoss.forward(output1, output2).

    matmul_dtype: dtype the pre-normalized operands are stored in / fed to the
      MXU (accumulation is always f32).  Use jnp.float32 for tight parity with
      an f32 reference; bf16 is the production default.
    tile: row/column tile upper bound.  512 sits past the HBM roofline knee on
      v5e/v7x (and most of the way on v6e) with bf16 operands; the wrapper
      clamps it for small inputs and keeps >=2 row blocks when possible.
    """
    o1 = jnp.asarray(output1, jnp.float32)
    o2 = jnp.asarray(output2, jnp.float32)
    assert o1.shape == o2.shape and o1.ndim == 2
    b, d = o1.shape
    n = 2 * b
    inv_temp = 1.0 / float(temperature)

    # One memory-bound pass: concat, f32 L2-normalize (eps like F.normalize),
    # fold 1/temperature into the query operand, cast to the MXU dtype.
    x = jnp.concatenate([o1, o2], axis=0)
    xn = x / jnp.maximum(
        jnp.sqrt(jnp.sum(x * x, axis=1, keepdims=True)), 1e-12)
    xq = (xn * inv_temp).astype(matmul_dtype)     # query rows (scaled)
    xk = xn.astype(matmul_dtype)                  # key rows

    # MXU/lane-friendly padding; zero rows/columns are masked in the kernel.
    d_pad = _round_up(d, 128)
    t = min(int(tile), max(8, _round_up(pl.cdiv(n, 2), 8)))
    t = max(8, t - t % 8)                         # keep the sublane constraint
    n_pad = _round_up(n, t)
    pad = ((0, n_pad - n), (0, d_pad - d))
    xq = jnp.pad(xq, pad)
    xk = jnp.pad(xk, pad)

    exp_bf16 = jnp.dtype(matmul_dtype) != jnp.dtype(jnp.float32)
    grid = (n_pad // t, n_pad // t)
    kernel = functools.partial(
        _infonce_kernel, half=b, n_valid=n, n_pad=n_pad, tile=t,
        exp_bf16=bool(exp_bf16))

    per_row = pl.pallas_call(
        kernel,
        out_shape=jax.ShapeDtypeStruct((n_pad, 1), jnp.float32),
        grid_spec=pltpu.PrefetchScalarGridSpec(
            num_scalar_prefetch=0,
            grid=grid,
            in_specs=[
                pl.BlockSpec((t, d_pad), lambda r, c: (r, 0)),   # scaled queries
                pl.BlockSpec((t, d_pad), lambda r, c: (c, 0)),   # keys
            ],
            out_specs=pl.BlockSpec((t, 1), lambda r, c: (r, 0)),
            scratch_shapes=[pltpu.VMEM((t, 1), jnp.float32),     # running max
                            pltpu.VMEM((t, 1), jnp.float32),     # running sum
                            pltpu.VMEM((t, 1), jnp.float32)],    # positive logit
        ),
        compiler_params=pltpu.CompilerParams(
            dimension_semantics=("parallel", "arbitrary"),
            vmem_limit_bytes=64 * 1024 * 1024),
    )(xq, xk)

    return jnp.sum(per_row) / n


def _infonce_ref(o1, o2, temperature=0.07):
    """Pure-JAX reference (faithful translation of the PyTorch module)."""
    o1 = o1 / jnp.maximum(jnp.linalg.norm(o1, axis=1, keepdims=True), 1e-12)
    o2 = o2 / jnp.maximum(jnp.linalg.norm(o2, axis=1, keepdims=True), 1e-12)
    b = o1.shape[0]
    out = jnp.concatenate([o1, o2], axis=0)
    sim = jnp.matmul(out, out.T, precision=lax.Precision.HIGHEST) / temperature
    sim = jnp.where(jnp.eye(2 * b, dtype=bool), -jnp.inf, sim)
    pos = (jnp.arange(2 * b) + b) % (2 * b)
    logz = jax.scipy.special.logsumexp(sim, axis=1)
    return jnp.mean(logz - sim[jnp.arange(2 * b), pos])


if __name__ == "__main__":
    key = jax.random.PRNGKey(0)
    k1, k2, k3, k4 = jax.random.split(key, 4)

    # Case 1: small shapes implied by the module (B=8, D=32).
    B, D = 8, 32
    o1 = jax.random.normal(k1, (B, D), dtype=jnp.float32)
    o2 = jax.random.normal(k2, (B, D), dtype=jnp.float32)
    ref = _infonce_ref(o1, o2, 0.07)

    loss_f32 = infonce_loss(o1, o2, 0.07, matmul_dtype=jnp.float32)
    jax.block_until_ready(loss_f32)
    assert jnp.allclose(loss_f32, ref, rtol=1e-3, atol=1e-3), (loss_f32, ref)

    loss_bf16 = infonce_loss(o1, o2, 0.07)            # default bf16 operands
    jax.block_until_ready(loss_bf16)
    assert jnp.allclose(loss_bf16, ref, rtol=5e-2, atol=5e-2), (loss_bf16, ref)

    # Case 2: multi-block tiling, row padding, wrap-around positives, online LSE.
    B2, D2 = 70, 96
    p1 = jax.random.normal(k3, (B2, D2), dtype=jnp.float32)
    p2 = jax.random.normal(k4, (B2, D2), dtype=jnp.float32)
    ref2 = _infonce_ref(p1, p2, 0.1)

    loss2 = infonce_loss(p1, p2, 0.1, matmul_dtype=jnp.float32, tile=64)
    jax.block_until_ready(loss2)
    assert jnp.allclose(loss2, ref2, rtol=1e-3, atol=1e-3), (loss2, ref2)

    loss2_bf16 = infonce_loss(p1, p2, 0.1, tile=64)
    jax.block_until_ready(loss2_bf16)
    assert jnp.allclose(loss2_bf16, ref2, rtol=5e-2, atol=5e-2), (loss2_bf16, ref2)

    print("KERNEL_OK")
</pallas_src>

<mosaic_0001>
module attributes {stable_mosaic.version = 11 : i64} {
  func.func @_infonce_kernel(%arg0: i32, %arg1: i32, %arg2: memref<8x128xf32, #tpu.memory_space<vmem>>, %arg3: memref<8x128xf32, #tpu.memory_space<vmem>>, %arg4: memref<8x1xf32, #tpu.memory_space<vmem>>, %arg5: memref<8x1xf32, #tpu.memory_space<vmem>>, %arg6: memref<8x1xf32, #tpu.memory_space<vmem>>, %arg7: memref<8x1xf32, #tpu.memory_space<vmem>>) attributes {dimension_semantics = [#tpu.dimension_semantics<parallel>, #tpu.dimension_semantics<arbitrary>], iteration_bounds = array<i64: 2, 2>, scalar_prefetch = 0 : i64, scratch_operands = 3 : i64, tpu.core_type = #tpu.core_type<tc>, window_params = [{transform_indices = @transform_0, window_bounds = array<i64: 8, 128>}, {transform_indices = @transform_1, window_bounds = array<i64: 8, 128>}, {transform_indices = @transform_2, window_bounds = array<i64: 8, 1>}]} {
    %c0_i32 = arith.constant 0 : i32
    %0 = arith.cmpi eq, %arg1, %c0_i32 : i32
    %1 = arith.extui %0 : i1 to i32
    %c0_i32_0 = arith.constant 0 : i32
    %2 = arith.cmpi ne, %1, %c0_i32_0 : i32
    scf.if %2 {
      %cst_32 = arith.constant -1.000000e+30 : f32
      %60 = vector.broadcast %cst_32 : f32 to vector<8x1xf32>
      %c0_33 = arith.constant 0 : index
      %c0_34 = arith.constant 0 : index
      %61 = vector.load %arg5[%c0_33, %c0_34] : memref<8x1xf32, #tpu.memory_space<vmem>>, vector<8x1xf32>
      tpu.vector_store %arg5[%c0_33, %c0_34], %60 {strides = array<i32>} : memref<8x1xf32, #tpu.memory_space<vmem>>, vector<8x1xf32>,
      %cst_35 = arith.constant 0.000000e+00 : f32
      %62 = vector.broadcast %cst_35 : f32 to vector<8x1xf32>
      %c0_36 = arith.constant 0 : index
      %c0_37 = arith.constant 0 : index
      %63 = vector.load %arg6[%c0_36, %c0_37] : memref<8x1xf32, #tpu.memory_space<vmem>>, vector<8x1xf32>
      tpu.vector_store %arg6[%c0_36, %c0_37], %62 {strides = array<i32>} : memref<8x1xf32, #tpu.memory_space<vmem>>, vector<8x1xf32>,
      %cst_38 = arith.constant 0.000000e+00 : f32
      %64 = vector.broadcast %cst_38 : f32 to vector<8x1xf32>
      %c0_39 = arith.constant 0 : index
      %c0_40 = arith.constant 0 : index
      %65 = vector.load %arg7[%c0_39, %c0_40] : memref<8x1xf32, #tpu.memory_space<vmem>>, vector<8x1xf32>
      tpu.vector_store %arg7[%c0_39, %c0_40], %64 {strides = array<i32>} : memref<8x1xf32, #tpu.memory_space<vmem>>, vector<8x1xf32>,
    } else {
    }
    %c0 = arith.constant 0 : index
    %c0_1 = arith.constant 0 : index
    %3 = vector.load %arg2[%c0, %c0_1] : memref<8x128xf32, #tpu.memory_space<vmem>>, vector<8x128xf32>
    %c0_2 = arith.constant 0 : index
    %c0_3 = arith.constant 0 : index
    %4 = vector.load %arg3[%c0_2, %c0_3] : memref<8x128xf32, #tpu.memory_space<vmem>>, vector<8x128xf32>
    %cst = arith.constant dense<0.000000e+00> : vector<8x8xf32>
    %5 = tpu.matmul %3, %4, %cst {dimension_numbers = #tpu.dot_dimension_numbers<[1], [1], [0], [0], [0, 0, 1, 0], [], []>} : vector<8x128xf32>, vector<8x128xf32>, vector<8x8xf32> -> vector<8x8xf32>
    %c8_i32 = arith.constant 8 : i32
    %6 = arith.muli %arg0, %c8_i32 : i32
    %c8_i32_4 = arith.constant 8 : i32
    %7 = arith.muli %arg1, %c8_i32_4 : i32
    %c16_i32 = arith.constant 16 : i32
    %8 = arith.subi %c16_i32, %6 : i32
    %c8_i32_5 = arith.constant 8 : i32
    %9 = arith.minsi %c8_i32_5, %8 : i32
    %c0_i32_6 = arith.constant 0 : i32
    %10 = arith.maxsi %9, %c0_i32_6 : i32
    %c8_i32_7 = arith.constant 8 : i32
    %11 = arith.addi %6, %c8_i32_7 : i32
    %c16_i32_8 = arith.constant 16 : i32
    %c0_i32_9 = arith.constant 0 : i32
    %12 = arith.cmpi eq, %c16_i32_8, %c0_i32_9 : i32
    %c1_i32 = arith.constant 1 : i32
    %13 = arith.select %12, %c1_i32, %c16_i32_8 : i32
    %14 = arith.remsi %11, %13 : i32
    %c0_i32_10 = arith.constant 0 : i32
    %15 = arith.cmpi ne, %14, %c0_i32_10 : i32
    %c0_i32_11 = arith.constant 0 : i32
    %16 = arith.cmpi slt, %14, %c0_i32_11 : i32
    %c0_i32_12 = arith.constant 0 : i32
    %17 = arith.cmpi slt, %13, %c0_i32_12 : i32
    %18 = arith.xori %16, %17 : i1
    %19 = arith.andi %18, %15 : i1
    %20 = arith.addi %14, %13 : i32
    %21 = arith.select %19, %20, %14 : i32
    %22 = arith.addi %21, %10 : i32
    %c8_i32_13 = arith.constant 8 : i32
    %23 = arith.addi %7, %c8_i32_13 : i32
    %24 = arith.cmpi slt, %21, %23 : i32
    %c16_i32_14 = arith.constant 16 : i32
    %25 = arith.minsi %22, %c16_i32_14 : i32
    %26 = arith.cmpi slt, %7, %25 : i32
    %27 = arith.andi %24, %26 : i1
    %c16_i32_15 = arith.constant 16 : i32
    %28 = arith.cmpi sgt, %22, %c16_i32_15 : i32
    %c16_i32_16 = arith.constant 16 : i32
    %29 = arith.subi %22, %c16_i32_16 : i32
    %30 = arith.cmpi slt, %7, %29 : i32
    %31 = arith.andi %28, %30 : i1
    %32 = arith.ori %27, %31 : i1
    %c0_i32_17 = arith.constant 0 : i32
    %33 = arith.cmpi sgt, %10, %c0_i32_17 : i32
    %34 = arith.andi %33, %32 : i1
    %35 = arith.extui %34 : i1 to i32
    %c0_i32_18 = arith.constant 0 : i32
    %36 = arith.cmpi ne, %35, %c0_i32_18 : i32
    scf.if %36 {
      %60 = tpu.iota {dimensions = array<i32: 0>} : vector<8x8xi32>
      %61 = vector.broadcast %6 : i32 to vector<8x8xi32>
      %62 = arith.addi %61, %60 : vector<8x8xi32>
      %63 = tpu.iota {dimensions = array<i32: 1>} : vector<8x8xi32>
      %64 = vector.broadcast %7 : i32 to vector<8x8xi32>
      %65 = arith.addi %64, %63 : vector<8x8xi32>
      %c8_i32_32 = arith.constant 8 : i32
      %66 = vector.broadcast %c8_i32_32 : i32 to vector<8x8xi32>
      %67 = arith.addi %62, %66 : vector<8x8xi32>
      %c16_i32_33 = arith.constant 16 : i32
      %68 = vector.broadcast %c16_i32_33 : i32 to vector<8x8xi32>
      %69 = arith.cmpi sge, %67, %68 : vector<8x8xi32>
      %c16_i32_34 = arith.constant 16 : i32
      %70 = vector.broadcast %c16_i32_34 : i32 to vector<8x8xi32>
      %71 = arith.subi %67, %70 : vector<8x8xi32>
      %72 = arith.select %69, %71, %67 : vector<8x8xi1>, vector<8x8xi32>
      %c0_35 = arith.constant 0 : index
      %c0_36 = arith.constant 0 : index
      %73 = vector.load %arg7[%c0_35, %c0_36] : memref<8x1xf32, #tpu.memory_space<vmem>>, vector<8x1xf32>
      %74 = arith.cmpi eq, %65, %72 : vector<8x8xi32>
      %cst_37 = arith.constant 0.000000e+00 : f32
      %75 = vector.broadcast %cst_37 : f32 to vector<8x8xf32>
      %76 = arith.select %74, %5, %75 : vector<8x8xi1>, vector<8x8xf32>
      %cst_38 = arith.constant dense<0.000000e+00> : vector<8xf32>
      %77 = vector.multi_reduction <add>, %76, %cst_38 [1] : vector<8x8xf32> to vector<8xf32>
      %78 = vector.shape_cast %77 : vector<8xf32> to vector<8x1xf32>
      %79 = arith.addf %73, %78 : vector<8x1xf32>
      %c0_39 = arith.constant 0 : index
      %c0_40 = arith.constant 0 : index
      %80 = vector.load %arg7[%c0_39, %c0_40] : memref<8x1xf32, #tpu.memory_space<vmem>>, vector<8x1xf32>
      tpu.vector_store %arg7[%c0_39, %c0_40], %79 {strides = array<i32>} : memref<8x1xf32, #tpu.memory_space<vmem>>, vector<8x1xf32>,
    } else {
    }
    %37 = arith.cmpi eq, %arg0, %arg1 : i32
    %38 = arith.extui %37 : i1 to i32
    %c0_i32_19 = arith.constant 0 : i32
    %39 = arith.cmpi ne, %38, %c0_i32_19 : i32
    %40 = scf.if %39 -> (vector<8x8xf32>) {
      %60 = tpu.iota {dimensions = array<i32: 0>} : vector<8x8xi32>
      %61 = vector.broadcast %6 : i32 to vector<8x8xi32>
      %62 = arith.addi %61, %60 : vector<8x8xi32>
      %63 = tpu.iota {dimensions = array<i32: 1>} : vector<8x8xi32>
      %64 = vector.broadcast %7 : i32 to vector<8x8xi32>
      %65 = arith.addi %64, %63 : vector<8x8xi32>
      %66 = arith.cmpi eq, %62, %65 : vector<8x8xi32>
      %cst_32 = arith.constant -1.000000e+30 : f32
      %67 = vector.broadcast %cst_32 : f32 to vector<8x8xf32>
      %68 = arith.select %66, %67, %5 : vector<8x8xi1>, vector<8x8xf32>
      scf.yield %68 : vector<8x8xf32>
    } else {
      scf.yield %5 : vector<8x8xf32>
    }
    %c0_20 = arith.constant 0 : index
    %c0_21 = arith.constant 0 : index
    %41 = vector.load %arg5[%c0_20, %c0_21] : memref<8x1xf32, #tpu.memory_space<vmem>>, vector<8x1xf32>
    %cst_22 = arith.constant dense<0xFF800000> : vector<8xf32>
    %42 = vector.multi_reduction <maximumf>, %40, %cst_22 [1] : vector<8x8xf32> to vector<8xf32>
    %43 = vector.shape_cast %42 : vector<8xf32> to vector<8x1xf32>
    %44 = arith.maximumf %41, %43 : vector<8x1xf32>
    %45 = vector.broadcast %44 : vector<8x1xf32> to vector<8x8xf32>
    %46 = arith.subf %40, %45 : vector<8x8xf32>
    %47 = math.exp %46 : vector<8x8xf32>
    %48 = arith.subf %41, %44 : vector<8x1xf32>
    %49 = math.exp %48 : vector<8x1xf32>
    %c0_23 = arith.constant 0 : index
    %c0_24 = arith.constant 0 : index
    %50 = vector.load %arg6[%c0_23, %c0_24] : memref<8x1xf32, #tpu.memory_space<vmem>>, vector<8x1xf32>
    %51 = arith.mulf %49, %50 : vector<8x1xf32>
    %cst_25 = arith.constant dense<0.000000e+00> : vector<8xf32>
    %52 = vector.multi_reduction <add>, %47, %cst_25 [1] : vector<8x8xf32> to vector<8xf32>
    %53 = vector.shape_cast %52 : vector<8xf32> to vector<8x1xf32>
    %54 = arith.addf %51, %53 : vector<8x1xf32>
    %c0_26 = arith.constant 0 : index
    %c0_27 = arith.constant 0 : index
    %55 = vector.load %arg6[%c0_26, %c0_27] : memref<8x1xf32, #tpu.memory_space<vmem>>, vector<8x1xf32>
    tpu.vector_store %arg6[%c0_26, %c0_27], %54 {strides = array<i32>} : memref<8x1xf32, #tpu.memory_space<vmem>>, vector<8x1xf32>,
    %c0_28 = arith.constant 0 : index
    %c0_29 = arith.constant 0 : index
    %56 = vector.load %arg5[%c0_28, %c0_29] : memref<8x1xf32, #tpu.memory_space<vmem>>, vector<8x1xf32>
    tpu.vector_store %arg5[%c0_28, %c0_29], %44 {strides = array<i32>} : memref<8x1xf32, #tpu.memory_space<vmem>>, vector<8x1xf32>,
    %c1_i32_30 = arith.constant 1 : i32
    %57 = arith.cmpi eq, %arg1, %c1_i32_30 : i32
    %58 = arith.extui %57 : i1 to i32
    %c0_i32_31 = arith.constant 0 : i32
    %59 = arith.cmpi ne, %58, %c0_i32_31 : i32
    scf.if %59 {
      %c0_32 = arith.constant 0 : index
      %c0_33 = arith.constant 0 : index
      %60 = vector.load %arg5[%c0_32, %c0_33] : memref<8x1xf32, #tpu.memory_space<vmem>>, vector<8x1xf32>
      %c0_34 = arith.constant 0 : index
      %c0_35 = arith.constant 0 : index
      %61 = vector.load %arg6[%c0_34, %c0_35] : memref<8x1xf32, #tpu.memory_space<vmem>>, vector<8x1xf32>
      %62 = math.log %61 : vector<8x1xf32>
      %63 = arith.addf %60, %62 : vector<8x1xf32>
      %c0_36 = arith.constant 0 : index
      %c0_37 = arith.constant 0 : index
      %64 = vector.load %arg7[%c0_36, %c0_37] : memref<8x1xf32, #tpu.memory_space<vmem>>, vector<8x1xf32>
      %65 = arith.subf %63, %64 : vector<8x1xf32>
      %66 = tpu.iota {dimensions = array<i32: 0>} : vector<8x1xi32>
      %67 = vector.broadcast %6 : i32 to vector<8x1xi32>
      %68 = arith.addi %67, %66 : vector<8x1xi32>
      %c16_i32_38 = arith.constant 16 : i32
      %69 = vector.broadcast %c16_i32_38 : i32 to vector<8x1xi32>
      %70 = arith.cmpi slt, %68, %69 : vector<8x1xi32>
      %cst_39 = arith.constant 0.000000e+00 : f32
      %71 = vector.broadcast %cst_39 : f32 to vector<8x1xf32>
      %72 = arith.select %70, %65, %71 : vector<8x1xi1>, vector<8x1xf32>
      %c0_40 = arith.constant 0 : index
      %c0_41 = arith.constant 0 : index
      %73 = vector.load %arg4[%c0_40, %c0_41] : memref<8x1xf32, #tpu.memory_space<vmem>>, vector<8x1xf32>
      tpu.vector_store %arg4[%c0_40, %c0_41], %72 {strides = array<i32>} : memref<8x1xf32, #tpu.memory_space<vmem>>, vector<8x1xf32>,
    } else {
    }
    return
  }
  func.func @transform_0(%arg0: i32, %arg1: i32) -> (i32, i32) {
    %c0_i32 = arith.constant 0 : i32
    %c0_i32_0 = arith.constant 0 : i32
    return %arg0, %c0_i32 : i32, i32
  }
  func.func @transform_1(%arg0: i32, %arg1: i32) -> (i32, i32) {
    %c0_i32 = arith.constant 0 : i32
    %c0_i32_0 = arith.constant 0 : i32
    return %arg1, %c0_i32 : i32, i32
  }
  func.func @transform_2(%arg0: i32, %arg1: i32) -> (i32, i32) {
    %c0_i32 = arith.constant 0 : i32
    %c0_i32_0 = arith.constant 0 : i32
    return %arg0, %c0_i32 : i32, i32
  }
}

</mosaic_0001>

<llo_original>
// kernel: tpu_custom_call.1
$region0: #{tpu_custom_call.1}
  #allocation0 [shape = 'u32[]', space=smem, size = 0x4, offset = 0x4, fixed_abs, tag = 'smem constant byte address 0x4 - core index']
  #allocation1 [shape = 'u32[144,128]{1,0:T(1,128)}', space=vmem, size = 0x12000, scoped, tag = 'internal scratch']
  #allocation2 [shape = 'f32[8,1]{1,0:T(8,128)}', space=vmem, size = 0x1000, scoped, tag = 'scratch operand']
  #allocation3 [shape = 'f32[8,1]{1,0:T(8,128)}', space=vmem, size = 0x1000, scoped, tag = 'scratch operand']
  #allocation4 [shape = 'f32[8,1]{1,0:T(8,128)}', space=vmem, size = 0x1000, scoped, tag = 'scratch operand']
  %s0 = inlined_call_operand.hbm [shape: f32[16,128], index: 0, kind: input, shape index: {}]
  %s1 = inlined_call_operand.hbm [shape: f32[16,128], index: 1, kind: input, shape index: {}]
  %s2 = inlined_call_operand.vmem [shape: f32[16,1], index: 2, kind: output, shape index: {}]
  %s3 = sld [smem:[#allocation0]]
  $region69: #{tpu_custom_call.1} parent=0
    _
  %s5 = ssub.s32 1, %s3
  %s6 = scalar_select 0, %s5, %s3
  $region1: #{tpu_custom_call.1} parent=0
    #allocation5 [shape = 'u8[8192]{0}', space=vmem, size = 0x2000, scoped, tag = 'input window, operand 0']
    #allocation6 [shape = 's32[2]{0}', space=sflag, size = 0x8, scoped, tag = 'scoped memory for tpu_custom_call.1']
    #allocation7 [shape = 'u8[8192]{0}', space=vmem, size = 0x2000, scoped, tag = 'input window, operand 1']
    #allocation8 [shape = 's32[2]{0}', space=sflag, size = 0x8, scoped, tag = 'scoped memory for tpu_custom_call.1']
    %7 = vsyncpa [#allocation6], 0
    %s8 = scalar_lea.sflag [#allocation6], 1
    %9 = vsyncpa %s8, 0
    %10 = vsyncpa [#allocation8], 0
    %s11 = scalar_lea.sflag [#allocation8], 1
    %12 = vsyncpa %s11, 0
    loop: start=0, step=1, limit=6
    $region2: #{tpu_custom_call.1} parent=1 // loop_pre_header
      _
    $region3: #{tpu_custom_call.1} parent=1 // loop_header
      %s14 = sphi 0, %s18
      %p15 = scmp.ge.s32.totalorder %s14, 6
      %s21 = sphi 0, %s33
      %s22 = sphi 0, %s29
      %s23 = sphi 0, %s21
      %s24 = sphi 0, %s22
      %s25 = sphi 0, %s23
      %s26 = sphi 0, %s24
      %s36 = sphi 0, %s38
      %s39 = sphi 0, %s36
      %s40 = sphi 0, %s39
      %s56 = sphi 0, %s40
      %s62 = sphi 0, %s64
      %s65 = sphi 0, %s62
      %s66 = sphi 0, %s65
      %s82 = sphi 0, %s66
      %s88 = sphi 0, %s90
      %s91 = sphi 0, %s88
      %s92 = sphi 0, %s91
      %s108 = sphi 0, %s92
    $region4: #{tpu_custom_call.1} parent=1 // loop_header_branch
      %17 = sbr.rel (%p15) target = $region8
    $region5: #{tpu_custom_call.1} parent=1 // loop_body
      %s19 = ssub.s32 %s14, 1
      %s20 = ssub.s32 %s14, 2
      %s27 = sadd.s32 1, %s22
      %p28 = scmp.ge.s32.totalorder %s27, 2
      %s29 = scalar_select %p28, 0, %s27
      %s30 = sadd.s32 1, %s21
      %s31 = scalar_select %p28, %s30, %s21
      %p32 = scmp.ge.s32.totalorder %s31, 2
      %s33 = scalar_select %p32, 0, %s31
      %s34 = ssub.s32 %s21, %s33
      %p35 = scmp.eq.s32.totalorder %s34, 0
      %s37 = sadd.s32 %s36, 1
      %s38 = scalar_select %p35, %s36, %s37
      %p41 = pneg %p35
      %p42 = scmp.eq.s32.totalorder %s14, 3
      %p43 = por %p41, %p42
      %p44 = scmp.ne.s32.totalorder %s36, %s39
      %p45 = scmp.eq.s32.totalorder %s14, 0
      %p46 = por %p44, %p45
      %p47 = scmp.ne.s32.totalorder %s36, %s39
      %p48 = scmp.eq.s32.totalorder %s19, 3
      %p49 = por %p47, %p48
      %p50 = scmp.ne.s32.totalorder %s39, %s40
      %p51 = scmp.eq.s32.totalorder %s19, 0
      %p52 = por %p50, %p51
      %p53 = scmp.ne.s32.totalorder %s39, %s40
      %p54 = scmp.eq.s32.totalorder %s20, 3
      %p55 = por %p53, %p54
      %p57 = scmp.ne.s32.totalorder %s40, %s56
      %p58 = scmp.eq.s32.totalorder %s20, 0
      %p59 = por %p57, %p58
      %s60 = ssub.s32 %s22, %s29
      %p61 = scmp.eq.s32.totalorder %s60, 0
      %s63 = sadd.s32 %s62, 1
      %s64 = scalar_select %p61, %s62, %s63
      %p67 = pneg %p61
      %p68 = scmp.eq.s32.totalorder %s14, 3
      %p69 = por %p67, %p68
      %p70 = scmp.ne.s32.totalorder %s62, %s65
      %p71 = scmp.eq.s32.totalorder %s14, 0
      %p72 = por %p70, %p71
      %p73 = scmp.ne.s32.totalorder %s62, %s65
      %p74 = scmp.eq.s32.totalorder %s19, 3
      %p75 = por %p73, %p74
      %p76 = scmp.ne.s32.totalorder %s65, %s66
      %p77 = scmp.eq.s32.totalorder %s19, 0
      %p78 = por %p76, %p77
      %p79 = scmp.ne.s32.totalorder %s65, %s66
      %p80 = scmp.eq.s32.totalorder %s20, 3
      %p81 = por %p79, %p80
      %p83 = scmp.ne.s32.totalorder %s66, %s82
      %p84 = scmp.eq.s32.totalorder %s20, 0
      %p85 = por %p83, %p84
      %s86 = ssub.s32 %s21, %s33
      %p87 = scmp.eq.s32.totalorder %s86, 0
      %s89 = sadd.s32 %s88, 1
      %s90 = scalar_select %p87, %s88, %s89
      %p93 = pneg %p87
      %p94 = scmp.eq.s32.totalorder %s14, 3
      %p95 = por %p93, %p94
      %p96 = scmp.ne.s32.totalorder %s88, %s91
      %p97 = scmp.eq.s32.totalorder %s14, 0
      %p98 = por %p96, %p97
      %p99 = scmp.ne.s32.totalorder %s88, %s91
      %p100 = scmp.eq.s32.totalorder %s19, 3
      %p101 = por %p99, %p100
      %p102 = scmp.ne.s32.totalorder %s91, %s92
      %p103 = scmp.eq.s32.totalorder %s19, 0
      %p104 = por %p102, %p103
      %p105 = scmp.ne.s32.totalorder %s91, %s92
      %p106 = scmp.eq.s32.totalorder %s20, 3
      %p107 = por %p105, %p106
      %p109 = scmp.ne.s32.totalorder %s92, %s108
      %p110 = scmp.eq.s32.totalorder %s20, 0
      %p111 = por %p109, %p110
      %p112 = scmp.le.s32.totalorder 1, %s14
      %p113 = scmp.lt.s32.totalorder %s14, 5
      %p114 = pnand %p112, %p113
      %p115 = pneg %p114
      // Predicated region
      $region9: #{tpu_custom_call.1} parent=5 // pred_check
        _
      $region10: #{tpu_custom_call.1} parent=5 // pred_check_branch
        %117 = sbr.rel (%p114) target = $region12
      $region11: #{tpu_custom_call.1} parent=5 // pred_region
        %s118 = ssub.s32 %s14, 1
      $region12: #{tpu_custom_call.1} parent=5 // pred_fallthru
        _
      %p119 = scmp.lt.s32.totalorder %s14, 4
      // Predicated region
      $region13: #{tpu_custom_call.1} parent=5 // pred_check
        %p120 = pneg %p119
      $region14: #{tpu_custom_call.1} parent=5 // pred_check_branch
        %122 = sbr.rel (%p120) target = $region16
      $region15: #{tpu_custom_call.1} parent=5 // pred_region
        // Predicated region
        $region17: #{tpu_custom_call.1} parent=15 // pred_check
          %p123 = pneg %p46
        $region18: #{tpu_custom_call.1} parent=15 // pred_check_branch
          %125 = sbr.rel (%p123) target = $region20
        $region19: #{tpu_custom_call.1} parent=15 // pred_region
          %s126 = sand.u32 %s36, 1
          %s127 = scalar_lea.sflag [#allocation6], %s126
          %s128 = sand.u32 %s36, 1
          %s129 = smul.addr %s128, 8
          %s130 = scalar_lea.vmem [#allocation5], %s129
          %s132 = ssub.s32 128, 128
          %133 = vsyncadd %s127, %s132
          %s134 = smul.addr %s21, 128
          %s135 = scalar_lea.hbm %s0, %s134
          %s137 = sshll.u32 %s130, 4
          %s138 = int_to_ptr.vmem [resolvable:$true] %s137
          %140 = dma.hbm_to_vmem [thread:$0]  %s135, 128, %s138, %s127
        $region20: #{tpu_custom_call.1} parent=15 // pred_fallthru
          _
        // Predicated region
        $region21: #{tpu_custom_call.1} parent=15 // pred_check
          %p141 = pneg %p72
        $region22: #{tpu_custom_call.1} parent=15 // pred_check_branch
          %143 = sbr.rel (%p141) target = $region24
        $region23: #{tpu_custom_call.1} parent=15 // pred_region
          %s144 = sand.u32 %s62, 1
          %s145 = scalar_lea.sflag [#allocation8], %s144
          %s146 = sand.u32 %s62, 1
          %s147 = smul.addr %s146, 8
          %s148 = scalar_lea.vmem [#allocation7], %s147
          %s150 = ssub.s32 128, 128
          %151 = vsyncadd %s145, %s150
          %s152 = smul.addr %s22, 128
          %s153 = scalar_lea.hbm %s1, %s152
          %s155 = sshll.u32 %s148, 4
          %s156 = int_to_ptr.vmem [resolvable:$true] %s155
          %158 = dma.hbm_to_vmem [thread:$0]  %s153, 128, %s156, %s145
        $region24: #{tpu_custom_call.1} parent=15 // pred_fallthru
          _
      $region16: #{tpu_custom_call.1} parent=5 // pred_fallthru
        _
      %p159 = scmp.le.s32.totalorder 1, %s14
      %p160 = scmp.lt.s32.totalorder %s14, 5
      %p161 = pnand %p159, %p160
      %p162 = pneg %p161
      // Predicated region
      $region25: #{tpu_custom_call.1} parent=5 // pred_check
        _
      $region26: #{tpu_custom_call.1} parent=5 // pred_check_branch
        %164 = sbr.rel (%p161) target = $region28
      $region27: #{tpu_custom_call.1} parent=5 // pred_region
        %s165 = ssub.s32 %s14, 1
        %s166 = sand.u32 %s39, 1
        %s167 = scalar_lea.sflag [#allocation6], %s166
        %s168 = sand.u32 %s39, 1
        %s169 = smul.addr %s168, 8
        %s170 = scalar_lea.vmem [#allocation5], %s169
        // Predicated region
        $region29: #{tpu_custom_call.1} parent=27 // pred_check
          %p171 = pneg %p52
        $region30: #{tpu_custom_call.1} parent=27 // pred_check_branch
          %173 = sbr.rel (%p171) target = $region32
        $region31: #{tpu_custom_call.1} parent=27 // pred_region
          %174 = dma.done %s167, 128
        $region32: #{tpu_custom_call.1} parent=27 // pred_fallthru
          _
        %s175 = sand.u32 %s65, 1
        %s176 = scalar_lea.sflag [#allocation8], %s175
        %s177 = sand.u32 %s65, 1
        %s178 = smul.addr %s177, 8
        %s179 = scalar_lea.vmem [#allocation7], %s178
        // Predicated region
        $region33: #{tpu_custom_call.1} parent=27 // pred_check
          %p180 = pneg %p78
        $region34: #{tpu_custom_call.1} parent=27 // pred_check_branch
          %182 = sbr.rel (%p180) target = $region36
        $region35: #{tpu_custom_call.1} parent=27 // pred_region
          %183 = dma.done %s176, 128
        $region36: #{tpu_custom_call.1} parent=27 // pred_fallthru
          _
        %s184 = sand.u32 %s39, 1
        %s185 = scalar_lea.sflag [#allocation6], %s184
        %s186 = sand.u32 %s39, 1
        %s187 = smul.addr %s186, 8
        %s188 = scalar_lea.vmem [#allocation5], %s187
        %p189 = pneg %p52
        %p190 = pneg %p49
        %s191 = sand.u32 %s65, 1
        %s192 = scalar_lea.sflag [#allocation8], %s191
        %s193 = sand.u32 %s65, 1
        %s194 = smul.addr %s193, 8
        %s195 = scalar_lea.vmem [#allocation7], %s194
        %p196 = pneg %p78
        %p197 = pneg %p75
        %p198 = pneg %p104
        %p199 = pneg %p101
        %p200 = scmp.lt.s32.totalorder %s23, 1
        %s201 = scalar_select %p200, %s23, 1
        %s202 = smul.addr %s201, 8
        %s203 = scalar_lea.vmem %s2, %s202
        %p204 = scmp.lt.s32.totalorder %s23, 1
        %s205 = scalar_select %p204, %s23, 1
        %s206 = smul.addr %s205, 8
        %s207 = scalar_lea.vmem %s2, %s206
        %p208 = scmp.eq.s32.totalorder %s24, 0
        // Predicated region
        $region37: #{tpu_custom_call.1} parent=27 // pred_check
          %p209 = pneg %p208
        $region38: #{tpu_custom_call.1} parent=27 // pred_check_branch
          %211 = sbr.rel (%p209) target = $region40
        $region39: #{tpu_custom_call.1} parent=27 // pred_region
          %vm212 = vcmask 7168
          %213 = vst.msk [vmem:[#allocation2] sm:$0xff] %vm212, -1e+30
          %214 = vst.msk [vmem:[#allocation3] sm:$0xff] %vm212, 0.0
          %215 = vst.msk [vmem:[#allocation4] sm:$0xff] %vm212, 0.0
        $region40: #{tpu_custom_call.1} parent=27 // pred_fallthru
          _
        %v216 = vld [vmem:[%s170] sm:$0xff]
        %v217 = vld [vmem:[%s179] sm:$0xff]
        %218 = vmatprep.subr.mxu0 0.0
        %219 = vmatpush1.xpose.msra.mxu0 0.0
        %220 = vmatprep.subr.mxu0 0.0
        %221 = vmatpush1.xpose.msra.mxu0 0.0
        %222 = vmatprep.subr.mxu0 0.0
        %223 = vmatpush1.xpose.msra.mxu0 0.0
        %224 = vmatprep.subr.mxu0 0.0
        %225 = vmatpush1.xpose.msra.mxu0 0.0
        %226 = vmatprep.subr.mxu0 0.0
        %227 = vmatpush1.xpose.msra.mxu0 0.0
        %228 = vmatprep.subr.mxu0 0.0
        %229 = vmatpush1.xpose.msra.mxu0 0.0
        %230 = vmatprep.subr.mxu0 0.0
        %231 = vmatpush1.xpose.msra.mxu0 0.0
        %232 = vmatprep.subr.mxu0 0.0
        %233 = vmatpush1.xpose.msra.mxu0 0.0
        %234 = vmatprep.subr.mxu0 0.0
        %235 = vmatpush1.xpose.msra.mxu0 0.0
        %236 = vmatprep.subr.mxu0 0.0
        %237 = vmatpush1.xpose.msra.mxu0 0.0
        %238 = vmatprep.subr.mxu0 0.0
        %239 = vmatpush1.xpose.msra.mxu0 0.0
        %240 = vmatprep.subr.mxu0 0.0
        %241 = vmatpush1.xpose.msra.mxu0 0.0
        %242 = vmatprep.subr.mxu0 0.0
        %243 = vmatpush1.xpose.msra.mxu0 0.0
        %244 = vmatprep.subr.mxu0 0.0
        %245 = vmatpush1.xpose.msra.mxu0 0.0
        %246 = vmatprep.subr.mxu0 0.0
        %247 = vmatpush1.xpose.msra.mxu0 0.0
        %248 = vmatprep.subr.mxu0 0.0
        %249 = vmatpush1.xpose.msra.mxu0 %v217
        %250 = vmatprep.subr.mxu0 0.0
        %251 = vmatpush2.xpose.msra.mxu0 0.0
        %252 = vmatprep.subr.mxu0 0.0
        %253 = vmatpush2.xpose.msra.mxu0 0.0
        %254 = vmatprep.subr.mxu0 0.0
        %255 = vmatpush2.xpose.msra.mxu0 0.0
        %256 = vmatprep.subr.mxu0 0.0
        %257 = vmatpush2.xpose.msra.mxu0 0.0
        %258 = vmatprep.subr.mxu0 0.0
        %259 = vmatpush2.xpose.msra.mxu0 0.0
        %260 = vmatprep.subr.mxu0 0.0
        %261 = vmatpush2.xpose.msra.mxu0 0.0
        %262 = vmatprep.subr.mxu0 0.0
        %263 = vmatpush2.xpose.msra.mxu0 0.0
        %264 = vmatprep.subr.mxu0 0.0
        %265 = vmatpush2.xpose.msra.mxu0 0.0
        %266 = vmatprep.subr.mxu0 0.0
        %267 = vmatpush2.xpose.msra.mxu0 0.0
        %268 = vmatprep.subr.mxu0 0.0
        %269 = vmatpush2.xpose.msra.mxu0 0.0
        %270 = vmatprep.subr.mxu0 0.0
        %271 = vmatpush2.xpose.msra.mxu0 0.0
        %272 = vmatprep.subr.mxu0 0.0
        %273 = vmatpush2.xpose.msra.mxu0 0.0
        %274 = vmatprep.subr.mxu0 0.0
        %275 = vmatpush2.xpose.msra.mxu0 0.0
        %276 = vmatprep.subr.mxu0 0.0
        %277 = vmatpush2.xpose.msra.mxu0 0.0
        %278 = vmatprep.subr.mxu0 0.0
        %279 = vmatpush2.xpose.msra.mxu0 0.0
        %280 = vmatprep.subr.mxu0 0.0
        %281 = vmatpush2.xpose.msra.mxu0 0.0
        %282 = vmatprep.mubr.f32.mxu0 0.0
        %283 = vmatmul.mubr.f32.gmra.mxu0 %v216
        %v284 = vpop.f32.mrf.mxu0
        %v285 = vadd.f32 0.0, %v284
        %v286 = vpop.f32.mrf.mxu0
        %287 = vdwg.mxu0
        %s288 = smul.u32 %s23, 8
        %s289 = smul.u32 %s24, 8
        %s290 = ssub.s32 16, %s288
        %p291 = scmp.lt.s32.totalorder %s290, 8
        %s292 = scalar_select %p291, %s290, 8
        %p293 = scmp.gt.s32.totalorder %s292, 0
        %s294 = scalar_select %p293, %s292, 0
        %s295 = sadd.s32 %s288, 8
        %p296 = scmp.lt.s32.totalorder %s295, 0
        %s297 = ssub.s32 0, %s295
        %s298 = scalar_select %p296, %s297, %s295
        %s299 = sand.u32 %s298, 15
        %s300 = ssub.s32 0, %s299
        %s301 = scalar_select %p296, %s300, %s299
        %p302 = scmp.ne.s32.totalorder %s301, 0
        %p303 = scmp.lt.s32.totalorder %s301, 0
        %p304 = pnand %p303, %p302
        %p305 = pneg %p304
        %s306 = sadd.s32 %s301, 16
        %s307 = scalar_select %p305, %s306, %s301
        %s308 = sadd.s32 %s307, %s294
        %s309 = sadd.s32 %s289, 8
        %p310 = scmp.lt.s32.totalorder %s307, %s309
        %p311 = scmp.lt.s32.totalorder %s308, 16
        %s312 = scalar_select %p311, %s308, 16
        %p313 = scmp.lt.s32.totalorder %s289, %s312
        %p314 = pnand %p310, %p313
        %p315 = pneg %p314
        %p316 = scmp.gt.s32.totalorder %s308, 16
        %s317 = ssub.s32 %s308, 16
        %p318 = scmp.lt.s32.totalorder %s289, %s317
        %p319 = pnand %p316, %p318
        %p320 = pneg %p319
        %p321 = por %p315, %p320
        %p322 = scmp.gt.s32.totalorder %s294, 0
        %p323 = pnand %p322, %p321
        %p324 = pneg %p323
        // Predicated region
        $region41: #{tpu_custom_call.1} parent=27 // pred_check
          _
        $region42: #{tpu_custom_call.1} parent=27 // pred_check_branch
          %326 = sbr.rel (%p323) target = $region44
        $region43: #{tpu_custom_call.1} parent=27 // pred_region
          %v327 = vlaneseq
          %v328 = vshrl.u32 %v327, 7
          %v329 = vstv %s288
          %v330 = vadd.s32 %v329, %v328
          %v331 = vlaneseq
          %v332 = vand.u32 %v331, 127
          %v333 = vstv %s289
          %v334 = vadd.s32 %v333, %v332
          %v335 = vadd.s32 %v330, 8
          %vm336 = vcmp.ge.s32.totalorder %v335, 16
          %v337 = vsub.s32 %v335, 16
          %v338 = vsel %vm336, %v337, %v335
          %v339 = vld [vmem:[#allocation4] sm:$0xff]
          %vm340 = vcmp.eq.s32.totalorder %v334, %v338
          %v341 = vsel %vm340, %v285, 0.0
          %vm342 = vcmask 64512
          %v343 = vsel %vm342, %v341, 0.0
          %344 = vadd.xlane.f32.xlu0 %v343
          %v345 = vpop.xlane.xlu0 %344
          %v346 = vadd.f32 %v339, %v345
          %vm347 = vcmask 7168
          %348 = vst.msk [vmem:[#allocation4] sm:$0xff] %vm347, %v346
        $region44: #{tpu_custom_call.1} parent=27 // pred_fallthru
          _
        %p349 = scmp.eq.s32.totalorder %s23, %s24
        // Predicated region
        $region45: #{tpu_custom_call.1} parent=27 // pred_check
          %p350 = pneg %p349
        $region46: #{tpu_custom_call.1} parent=27 // pred_check_branch
          %352 = sbr.rel (%p350) target = $region48
        $region47: #{tpu_custom_call.1} parent=27 // pred_region
          %v353 = vlaneseq
          %v354 = vshrl.u32 %v353, 7
          %v355 = vstv %s288
          %v356 = vadd.s32 %v355, %v354
          %v357 = vlaneseq
          %v358 = vand.u32 %v357, 127
          %v359 = vstv %s289
          %v360 = vadd.s32 %v359, %v358
          %vm361 = vcmp.eq.s32.totalorder %v356, %v360
          %v362 = vsel %vm361, -1e+30, %v285
        $region48: #{tpu_custom_call.1} parent=27 // pred_fallthru
          %v363 = vphi 0, %v362
        %p364 = pneg %p349
        // Predicated region
        $region49: #{tpu_custom_call.1} parent=27 // pred_check
          _
        $region50: #{tpu_custom_call.1} parent=27 // pred_check_branch
          %366 = sbr.rel (%p349) target = $region52
        $region51: #{tpu_custom_call.1} parent=27 // pred_region
          _
        $region52: #{tpu_custom_call.1} parent=27 // pred_fallthru
          %v367 = vphi %v363, %v285
        %v368 = vld [vmem:[#allocation2] sm:$0xff]
        %vm369 = vcmask 64512
        %v370 = vsel %vm369, %v367, -inf
        %371 = vmax.xlane.f32.xlu0 %v370
        %v372 = vpop.xlane.xlu0 %371
        %v373 = vmax.f32 %v368, %v372
        %375 = vset.pattern.permute.xlu0 0
        %376 = vperm.xlu0 %375, %v373
        %v377 = vpop.permute.xlu0 %376
        %v379 = vsub.f32 %v367, %v377
        %v380 = vmul.f32 %v379, 1.442695
        %v381 = vpow.pop %v380
        %v382 = vsub.f32 %v368, %v373
        %v383 = vmul.f32 %v382, 1.442695
        %v384 = vpow.pop %v383
        %v385 = vld [vmem:[#allocation3] sm:$0xff]
        %v386 = vmul.f32 %v384, %v385
        %v387 = vsel %vm369, %v381, 0.0
        %388 = vadd.xlane.f32.xlu0 %v387
        %v389 = vpop.xlane.xlu0 %388
        %v390 = vadd.f32 %v386, %v389
        %vm391 = vcmask 7168
        %392 = vst.msk [vmem:[#allocation3] sm:$0xff] %vm391, %v390
        %393 = vst.msk [vmem:[#allocation2] sm:$0xff] %vm391, %v373
        %p394 = scmp.eq.s32.totalorder %s24, 1
        // Predicated region
        $region53: #{tpu_custom_call.1} parent=27 // pred_check
          %p395 = pneg %p394
        $region54: #{tpu_custom_call.1} parent=27 // pred_check_branch
          %397 = sbr.rel (%p395) target = $region56
        $region55: #{tpu_custom_call.1} parent=27 // pred_region
          %v398 = vld [vmem:[#allocation2] sm:$0xff]
          %v399 = vld [vmem:[#allocation3] sm:$0xff]
          %v400 = vlog2.pop %v399
          %v401 = vmul.f32 %v400, 0.6931472
          %v402 = vadd.f32 %v398, %v401
          %v403 = vld [vmem:[#allocation4] sm:$0xff]
          %v404 = vsub.f32 %v402, %v403
          %v405 = vlaneseq
          %v406 = vshrl.u32 %v405, 7
          %v407 = vstv %s288
          %v408 = vadd.s32 %v407, %v406
          %vm409 = vcmp.lt.s32.totalorder %v408, 16
          %v410 = vsel %vm409, %v404, 0.0
          %411 = vst.msk [vmem:[%s207] sm:$0xff] %vm391, %v410
        $region56: #{tpu_custom_call.1} parent=27 // pred_fallthru
          _
        %p412 = scmp.lt.s32.totalorder %s23, 1
        %s413 = scalar_select %p412, %s23, 1
        %s414 = smul.addr %s413, 8
        %s415 = scalar_lea.vmem %s2, %s414
        // Predicated region
        $region57: #{tpu_custom_call.1} parent=27 // pred_check
          %p416 = pneg %p101
        $region58: #{tpu_custom_call.1} parent=27 // pred_check_branch
          %418 = sbr.rel (%p416) target = $region60
        $region59: #{tpu_custom_call.1} parent=27 // pred_region
          _
        $region60: #{tpu_custom_call.1} parent=27 // pred_fallthru
          _
      $region28: #{tpu_custom_call.1} parent=5 // pred_fallthru
        _
      %p419 = scmp.le.s32.totalorder 2, %s14
      // Predicated region
      $region61: #{tpu_custom_call.1} parent=5 // pred_check
        %p420 = pneg %p419
      $region62: #{tpu_custom_call.1} parent=5 // pred_check_branch
        %422 = sbr.rel (%p420) target = $region64
      $region63: #{tpu_custom_call.1} parent=5 // pred_region
        %s423 = ssub.s32 %s14, 2
        // Predicated region
        $region65: #{tpu_custom_call.1} parent=63 // pred_check
          %p424 = pneg %p107
        $region66: #{tpu_custom_call.1} parent=63 // pred_check_branch
          %426 = sbr.rel (%p424) target = $region68
        $region67: #{tpu_custom_call.1} parent=63 // pred_region
          %p427 = scmp.lt.s32.totalorder %s25, 1
          %s428 = scalar_select %p427, %s25, 1
          %s429 = smul.addr %s428, 8
          %s430 = scalar_lea.vmem %s2, %s429
        $region68: #{tpu_custom_call.1} parent=63 // pred_fallthru
          _
      $region64: #{tpu_custom_call.1} parent=5 // pred_fallthru
        _
    $region6: #{tpu_custom_call.1} parent=1 // loop_footer
      %s18 = sadd.s32 1, %s14
    $region7: #{tpu_custom_call.1} parent=1 // loop_footer_branch
      %13 = sbr.rel target = $region3
    $region8: #{tpu_custom_call.1} parent=1 // loop_exit
      _
    %431 = vsyncpa [#allocation6], 1
    %s432 = scalar_lea.sflag [#allocation6], 1
    %433 = vsyncpa %s432, 1
    %434 = vsyncpa [#allocation8], 1
    %s435 = scalar_lea.sflag [#allocation8], 1
    %436 = vsyncpa %s435, 1

</llo_original>
